<compile_context>
chip_gen: v7x
topology: tpu7x:2x2x1
jax: 0.10.0
libtpu: 0.0.40
codegen_flags: <defaults>
</compile_context>

<pallas_src>
import functools

import jax
import jax.numpy as jnp
from jax.experimental import pallas as pl
from jax.experimental.pallas import tpu as pltpu


def _round_up(x, m):
    return (x + m - 1) // m * m


def _cdiv(a, b):
    return (a + b - 1) // b


def _landmark_head_kernel(x_ref, w_ref, b_ref, o_ref, *, out_c, bf16_mxu):
    # x_ref: (1, C, T)        activations, channel-major (native NCHW view)
    # w_ref: (OUTC_PAD, C)    weights (rows >= out_c are zero padding)
    # b_ref: (OUTC_PAD, 1)    f32 bias column
    # o_ref: (1, T, out_c)    pixel-major output block (permute fused here)
    x = x_ref[0]          # (C, T)   lane-dense
    w = w_ref[...]        # (OUTC_PAD, C)

    if bf16_mxu:
        # In-VMEM downcast: single-pass MXU (important on v5e), f32 accumulate.
        # No extra HBM traffic -- the cast never round-trips to HBM.
        x = x.astype(jnp.bfloat16)
        w = w.astype(jnp.bfloat16)
        acc = jnp.dot(w, x, preferred_element_type=jnp.float32)
    else:
        # Strict f32 (matches a true f32 PyTorch conv).  The kernel is
        # HBM-bandwidth bound, so the extra MXU passes are free.
        acc = jnp.dot(w, x, preferred_element_type=jnp.float32,
                      precision=jax.lax.Precision.HIGHEST)

    acc = acc + b_ref[...]            # (OUTC_PAD, T), f32 epilogue on the VPU

    # Fused output permute: XLU transpose of the small accumulator tile.
    # XLU/store slots are nearly idle in this DMA-bound kernel, and the HBM
    # writeback of a (T, out_c) tile into (N, HW, out_c) is fully contiguous.
    acc_t = acc.T                     # (T, OUTC_PAD)
    o_ref[0] = acc_t[:, :out_c].astype(o_ref.dtype)


def landmark_head(x_nchw, weight, bias, num_anchors=3, tile_hw=4096,
                  bf16_mxu=False, out_dtype=None):
    """1x1-conv landmark head.

    x_nchw:  (N, C, H, W) activations, NCHW (native PyTorch layout).
    weight:  (A*10, C) or PyTorch conv weight (A*10, C, 1, 1).
    bias:    (A*10,)
    Returns: (N, H*W*A, 10), matching the PyTorch module output.
    """
    N, C, H, W = x_nchw.shape
    if weight.ndim == 4:
        weight = weight.reshape(weight.shape[0], weight.shape[1])
    out_c = weight.shape[0]
    assert out_c == num_anchors * 10
    assert weight.shape[1] == C

    HW = H * W
    if out_dtype is None:
        out_dtype = x_nchw.dtype
    if x_nchw.dtype == jnp.bfloat16:
        bf16_mxu = True  # operands are already narrow; use the bf16 MXU path

    # Free view: keep the activation in its native channel-major layout.
    # NOTE: no wrapper-side astype -- a standalone convert would add HBM
    # traffic; any narrowing happens inside the kernel after the VMEM load.
    x = x_nchw.reshape(N, C, HW)

    # Pad the tiny weight/bias so the in-kernel transpose sees an
    # (8,128)-friendly sublane extent; padded rows are zero.
    out_c_pad = _round_up(out_c, 8)
    w_pad = jnp.zeros((out_c_pad, C), dtype=weight.dtype).at[:out_c].set(weight)
    b_pad = jnp.zeros((out_c_pad, 1), dtype=jnp.float32).at[:out_c, 0].set(
        bias.astype(jnp.float32))

    # Lane-dense tile along H*W.
    tile_hw = max(128, min(tile_hw, _round_up(HW, 128)))
    # Megacore / pipelining: guarantee >= 2 grid steps whenever HW allows it
    # (v7x has 2 TensorCores; a 1-step grid also has no DMA/compute overlap).
    if N * _cdiv(HW, tile_hw) < 2 and HW > 128:
        tile_hw = _round_up(_cdiv(HW, 2), 128)
    grid_hw = _cdiv(HW, tile_hw)

    x_bytes = jnp.dtype(x.dtype).itemsize
    o_bytes = jnp.dtype(out_dtype).itemsize
    # Double-buffered input/output blocks + f32 accumulator/transpose temps +
    # resident weight/bias; never below the 32 MiB scoped default, raised only
    # when large tiles actually need it.
    vmem_bytes = (2 * C * tile_hw * x_bytes
                  + 2 * tile_hw * out_c * o_bytes
                  + 2 * out_c_pad * tile_hw * 4
                  + out_c_pad * C * x_bytes + out_c_pad * 4)
    vmem_limit = max(32 << 20,
                     min(int(vmem_bytes * 1.5) + (2 << 20), 96 << 20))

    cost = pl.CostEstimate(
        flops=2 * N * HW * C * out_c,
        transcendentals=0,
        bytes_accessed=(N * C * HW * x_bytes + N * HW * out_c * o_bytes
                        + out_c_pad * C * x_bytes + out_c_pad * 4),
    )

    kernel = functools.partial(_landmark_head_kernel,
                               out_c=out_c, bf16_mxu=bf16_mxu)

    out = pl.pallas_call(
        kernel,
        out_shape=jax.ShapeDtypeStruct((N, HW, out_c), out_dtype),
        grid_spec=pltpu.PrefetchScalarGridSpec(
            num_scalar_prefetch=0,
            grid=(N, grid_hw),
            in_specs=[
                # Activation block: (1, C, tile_hw) -- lane-dense last dim.
                pl.BlockSpec((1, C, tile_hw), lambda n, j: (n, 0, j)),
                # Whole (padded) weight matrix, resident across the grid.
                pl.BlockSpec((out_c_pad, C), lambda n, j: (0, 0)),
                # Bias column, f32.
                pl.BlockSpec((out_c_pad, 1), lambda n, j: (0, 0)),
            ],
            # Pixel-major output block: permute already fused in the kernel;
            # the HBM writeback of (tile_hw, out_c) is contiguous.
            out_specs=pl.BlockSpec((1, tile_hw, out_c), lambda n, j: (n, j, 0)),
        ),
        compiler_params=pltpu.CompilerParams(
            dimension_semantics=("parallel", "parallel"),
            vmem_limit_bytes=vmem_limit,
        ),
        cost_estimate=cost,
    )(x, w_pad, b_pad)

    # (N, HW, out_c) -> (N, HW*A, 10): row-major metadata-only reshape
    # (identical to torch permute(0,2,3,1).contiguous().view(N,-1,10)).
    return out.reshape(N, HW * num_anchors, 10)


if __name__ == "__main__":
    def reference(x, w4, b, A):
        n, c, h, w = x.shape
        w2 = w4.reshape(w4.shape[0], c)
        y = jnp.transpose(x, (0, 2, 3, 1)).reshape(-1, c) @ w2.T + b
        return y.reshape(n, h * w * A, 10)

    # ---- main config: N=2, C=32, H=W=16, A=3 (out_c = 30) ----
    N, C, H, W, A = 2, 32, 16, 16, 3
    out_c = A * 10
    kx, kw, kb = jax.random.split(jax.random.PRNGKey(0), 3)
    x = jax.random.normal(kx, (N, C, H, W), dtype=jnp.float32)
    weight = jax.random.normal(kw, (out_c, C, 1, 1), dtype=jnp.float32) * 0.05
    bias = jax.random.normal(kb, (out_c,), dtype=jnp.float32) * 0.01

    ref = reference(x, weight, bias, A)

    out = jax.block_until_ready(landmark_head(x, weight, bias, num_anchors=A))
    assert out.shape == (N, H * W * A, 10)
    assert jnp.allclose(out, ref, atol=1e-4, rtol=1e-4), "f32 path mismatch"

    # bf16-MXU path (in-VMEM cast, f32 accumulation) -- looser tolerance.
    out_bf = jax.block_until_ready(
        landmark_head(x, weight, bias, num_anchors=A, bf16_mxu=True))
    assert out_bf.shape == (N, H * W * A, 10)
    assert jnp.allclose(out_bf, ref, atol=3e-2, rtol=3e-2), "bf16 path mismatch"

    # ---- ragged config: HW = 360 (not a multiple of 128), N = 1 ----
    # Exercises the padded-read / masked-writeback last block and the
    # ">= 2 grid steps" clamp (tile_hw drops to 256 -> 2-step grid).
    N2, C2, H2, W2 = 1, 48, 20, 18
    kx2, kw2, kb2 = jax.random.split(jax.random.PRNGKey(1), 3)
    x2 = jax.random.normal(kx2, (N2, C2, H2, W2), dtype=jnp.float32)
    w2 = jax.random.normal(kw2, (out_c, C2, 1, 1), dtype=jnp.float32) * 0.05
    b2 = jax.random.normal(kb2, (out_c,), dtype=jnp.float32) * 0.01
    ref2 = reference(x2, w2, b2, A)
    out2 = jax.block_until_ready(landmark_head(x2, w2, b2, num_anchors=A))
    assert out2.shape == (N2, H2 * W2 * A, 10)
    assert jnp.allclose(out2, ref2, atol=1e-4, rtol=1e-4), "ragged mismatch"

    print("KERNEL_OK")
</pallas_src>

<mosaic_0001>
module attributes {stable_mosaic.version = 11 : i64} {
  func.func @_landmark_head_kernel(%arg0: i32, %arg1: i32, %arg2: memref<1x32x256xf32, #tpu.memory_space<vmem>>, %arg3: memref<32x32xf32, #tpu.memory_space<vmem>>, %arg4: memref<32x1xf32, #tpu.memory_space<vmem>>, %arg5: memref<1x256x30xf32, #tpu.memory_space<vmem>>) attributes {dimension_semantics = [#tpu.dimension_semantics<parallel>, #tpu.dimension_semantics<parallel>], iteration_bounds = array<i64: 2, 1>, scalar_prefetch = 0 : i64, scratch_operands = 0 : i64, tpu.core_type = #tpu.core_type<tc>, window_params = [{transform_indices = @transform_0, window_bounds = array<i64: 1, 32, 256>}, {pipeline_mode = #tpu.pipeline_mode<synchronous>, transform_indices = @transform_1, window_bounds = array<i64: 32, 32>}, {pipeline_mode = #tpu.pipeline_mode<synchronous>, transform_indices = @transform_2, window_bounds = array<i64: 32, 1>}, {transform_indices = @transform_3, window_bounds = array<i64: 1, 256, 30>}]} {
    %c0 = arith.constant 0 : index
    %c0_0 = arith.constant 0 : index
    %c0_1 = arith.constant 0 : index
    %0 = vector.load %arg2[%c0, %c0_0, %c0_1] : memref<1x32x256xf32, #tpu.memory_space<vmem>>, vector<1x32x256xf32>
    %1 = vector.shape_cast %0 : vector<1x32x256xf32> to vector<32x256xf32>
    %c0_2 = arith.constant 0 : index
    %c0_3 = arith.constant 0 : index
    %2 = vector.load %arg3[%c0_2, %c0_3] : memref<32x32xf32, #tpu.memory_space<vmem>>, vector<32x32xf32>
    %cst = arith.constant dense<0.000000e+00> : vector<32x256xf32>
    %3 = tpu.matmul %2, %1, %cst {dimension_numbers = #tpu.dot_dimension_numbers<[1], [0], [0], [1], [0, 0, 1, 1], [], []>, precision = #tpu.contract_precision<fp32>} : vector<32x32xf32>, vector<32x256xf32>, vector<32x256xf32> -> vector<32x256xf32>
    %c0_4 = arith.constant 0 : index
    %c0_5 = arith.constant 0 : index
    %4 = vector.load %arg4[%c0_4, %c0_5] : memref<32x1xf32, #tpu.memory_space<vmem>>, vector<32x1xf32>
    %5 = vector.broadcast %4 : vector<32x1xf32> to vector<32x256xf32>
    %6 = arith.addf %3, %5 : vector<32x256xf32>
    %7 = tpu.transpose %6, [1, 0] : vector<32x256xf32> -> vector<256x32xf32>
    %8 = vector.extract_strided_slice %7 {offsets = [0, 0], sizes = [256, 30], strides = [1, 1]} : vector<256x32xf32> to vector<256x30xf32>
    %c0_6 = arith.constant 0 : index
    %c0_7 = arith.constant 0 : index
    %c0_8 = arith.constant 0 : index
    %9 = vector.load %arg5[%c0_6, %c0_7, %c0_8] : memref<1x256x30xf32, #tpu.memory_space<vmem>>, vector<1x256x30xf32>
    %10 = vector.shape_cast %9 : vector<1x256x30xf32> to vector<256x30xf32>
    %11 = vector.shape_cast %8 : vector<256x30xf32> to vector<1x256x30xf32>
    tpu.vector_store %arg5[%c0_6, %c0_7, %c0_8], %11 {strides = array<i32>} : memref<1x256x30xf32, #tpu.memory_space<vmem>>, vector<1x256x30xf32>,
    return
  }
  func.func @transform_0(%arg0: i32, %arg1: i32) -> (i32, i32, i32) {
    %c0_i32 = arith.constant 0 : i32
    %c0_i32_0 = arith.constant 0 : i32
    return %arg0, %c0_i32, %arg1 : i32, i32, i32
  }
  func.func @transform_1(%arg0: i32, %arg1: i32) -> (i32, i32) {
    %c0_i32 = arith.constant 0 : i32
    %c0_i32_0 = arith.constant 0 : i32
    %c0_i32_1 = arith.constant 0 : i32
    return %c0_i32, %c0_i32_0 : i32, i32
  }
  func.func @transform_2(%arg0: i32, %arg1: i32) -> (i32, i32) {
    %c0_i32 = arith.constant 0 : i32
    %c0_i32_0 = arith.constant 0 : i32
    %c0_i32_1 = arith.constant 0 : i32
    return %c0_i32, %c0_i32_0 : i32, i32
  }
  func.func @transform_3(%arg0: i32, %arg1: i32) -> (i32, i32, i32) {
    %c0_i32 = arith.constant 0 : i32
    %c0_i32_0 = arith.constant 0 : i32
    return %arg0, %arg1, %c0_i32 : i32, i32, i32
  }
}

</mosaic_0001>

<llo_original>
// kernel: tpu_custom_call.1
$region0: #{tpu_custom_call.1}
  #allocation0 [shape = 'u32[]', space=smem, size = 0x4, offset = 0x4, fixed_abs, tag = 'smem constant byte address 0x4 - core index']
  #allocation1 [shape = 'u32[144,128]{1,0:T(1,128)}', space=vmem, size = 0x12000, scoped, tag = 'internal scratch']
  %s0 = inlined_call_operand.hbm [shape: f32[2,32,256], index: 0, kind: input, shape index: {}]
  %s1 = inlined_call_operand.vmem [shape: f32[32,32], index: 1, kind: input, shape index: {}]
  %s2 = inlined_call_operand.vmem [shape: f32[32,1], index: 2, kind: input, shape index: {}]
  %s3 = inlined_call_operand.vmem [shape: f32[2,256,30], index: 3, kind: output, shape index: {}]
  %s4 = sld [smem:[#allocation0]]
  $region49: #{tpu_custom_call.1} parent=0
    _
  %s6 = ssub.s32 1, %s4
  %s7 = scalar_select 0, %s6, %s4
  $region1: #{tpu_custom_call.1} parent=0
    #allocation2 [shape = 'u8[65536]{0}', space=vmem, size = 0x10000, scoped, tag = 'input window, operand 0']
    #allocation3 [shape = 's32[2]{0}', space=sflag, size = 0x8, scoped, tag = 'scoped memory for tpu_custom_call.1']
    %8 = vsyncpa [#allocation3], 0
    %s9 = scalar_lea.sflag [#allocation3], 1
    %10 = vsyncpa %s9, 0
    loop: start=0, step=1, limit=4
    $region2: #{tpu_custom_call.1} parent=1 // loop_pre_header
      _
    $region3: #{tpu_custom_call.1} parent=1 // loop_header
      %s12 = sphi 0, %s16
      %p13 = scmp.ge.s32.totalorder %s12, 4
      %s19 = sphi 0, %s31
      %s20 = sphi 0, %s27
      %s21 = sphi 0, %s19
      %s22 = sphi 0, %s20
      %s23 = sphi 0, %s21
      %s24 = sphi 0, %s22
      %s36 = sphi 0, %s38
      %s39 = sphi 0, %s36
      %s40 = sphi 0, %s39
      %s56 = sphi 0, %s40
      %s60 = sphi 0, %s60
      %s62 = sphi 0, %s60
      %s63 = sphi 0, %s62
      %s77 = sphi 0, %s63
      %s81 = sphi 0, %s81
      %s83 = sphi 0, %s81
      %s84 = sphi 0, %s83
      %s98 = sphi 0, %s84
      %s106 = sphi 0, %s108
      %s109 = sphi 0, %s106
      %s110 = sphi 0, %s109
      %s126 = sphi 0, %s110
    $region4: #{tpu_custom_call.1} parent=1 // loop_header_branch
      %15 = sbr.rel (%p13) target = $region8
    $region5: #{tpu_custom_call.1} parent=1 // loop_body
      %s17 = ssub.s32 %s12, 1
      %s18 = ssub.s32 %s12, 2
      %s25 = sadd.s32 1, %s20
      %p26 = scmp.ge.s32.totalorder %s25, 1
      %s27 = scalar_select %p26, 0, %s25
      %s28 = sadd.s32 1, %s19
      %s29 = scalar_select %p26, %s28, %s19
      %p30 = scmp.ge.s32.totalorder %s29, 2
      %s31 = scalar_select %p30, 0, %s29
      %s32 = ssub.s32 %s19, %s31
      %s33 = ssub.s32 %s20, %s27
      %s34 = sor.u32 %s32, %s33
      %p35 = scmp.eq.s32.totalorder %s34, 0
      %s37 = sadd.s32 %s36, 1
      %s38 = scalar_select %p35, %s36, %s37
      %p41 = pneg %p35
      %p42 = scmp.eq.s32.totalorder %s12, 1
      %p43 = por %p41, %p42
      %p44 = scmp.ne.s32.totalorder %s36, %s39
      %p45 = scmp.eq.s32.totalorder %s12, 0
      %p46 = por %p44, %p45
      %p47 = scmp.ne.s32.totalorder %s36, %s39
      %p48 = scmp.eq.s32.totalorder %s17, 1
      %p49 = por %p47, %p48
      %p50 = scmp.ne.s32.totalorder %s39, %s40
      %p51 = scmp.eq.s32.totalorder %s17, 0
      %p52 = por %p50, %p51
      %p53 = scmp.ne.s32.totalorder %s39, %s40
      %p54 = scmp.eq.s32.totalorder %s18, 1
      %p55 = por %p53, %p54
      %p57 = scmp.ne.s32.totalorder %s40, %s56
      %p58 = scmp.eq.s32.totalorder %s18, 0
      %p59 = por %p57, %p58
      %s61 = sadd.s32 %s60, 1
      %p64 = scmp.eq.s32.totalorder %s12, 1
      %p65 = scmp.ne.s32.totalorder %s60, %s62
      %p66 = scmp.eq.s32.totalorder %s12, 0
      %p67 = por %p65, %p66
      %p68 = scmp.ne.s32.totalorder %s60, %s62
      %p69 = scmp.eq.s32.totalorder %s17, 1
      %p70 = por %p68, %p69
      %p71 = scmp.ne.s32.totalorder %s62, %s63
      %p72 = scmp.eq.s32.totalorder %s17, 0
      %p73 = por %p71, %p72
      %p74 = scmp.ne.s32.totalorder %s62, %s63
      %p75 = scmp.eq.s32.totalorder %s18, 1
      %p76 = por %p74, %p75
      %p78 = scmp.ne.s32.totalorder %s63, %s77
      %p79 = scmp.eq.s32.totalorder %s18, 0
      %p80 = por %p78, %p79
      %s82 = sadd.s32 %s81, 1
      %p85 = scmp.eq.s32.totalorder %s12, 1
      %p86 = scmp.ne.s32.totalorder %s81, %s83
      %p87 = scmp.eq.s32.totalorder %s12, 0
      %p88 = por %p86, %p87
      %p89 = scmp.ne.s32.totalorder %s81, %s83
      %p90 = scmp.eq.s32.totalorder %s17, 1
      %p91 = por %p89, %p90
      %p92 = scmp.ne.s32.totalorder %s83, %s84
      %p93 = scmp.eq.s32.totalorder %s17, 0
      %p94 = por %p92, %p93
      %p95 = scmp.ne.s32.totalorder %s83, %s84
      %p96 = scmp.eq.s32.totalorder %s18, 1
      %p97 = por %p95, %p96
      %p99 = scmp.ne.s32.totalorder %s84, %s98
      %p100 = scmp.eq.s32.totalorder %s18, 0
      %p101 = por %p99, %p100
      %s102 = ssub.s32 %s19, %s31
      %s103 = ssub.s32 %s20, %s27
      %s104 = sor.u32 %s102, %s103
      %p105 = scmp.eq.s32.totalorder %s104, 0
      %s107 = sadd.s32 %s106, 1
      %s108 = scalar_select %p105, %s106, %s107
      %p111 = pneg %p105
      %p112 = scmp.eq.s32.totalorder %s12, 1
      %p113 = por %p111, %p112
      %p114 = scmp.ne.s32.totalorder %s106, %s109
      %p115 = scmp.eq.s32.totalorder %s12, 0
      %p116 = por %p114, %p115
      %p117 = scmp.ne.s32.totalorder %s106, %s109
      %p118 = scmp.eq.s32.totalorder %s17, 1
      %p119 = por %p117, %p118
      %p120 = scmp.ne.s32.totalorder %s109, %s110
      %p121 = scmp.eq.s32.totalorder %s17, 0
      %p122 = por %p120, %p121
      %p123 = scmp.ne.s32.totalorder %s109, %s110
      %p124 = scmp.eq.s32.totalorder %s18, 1
      %p125 = por %p123, %p124
      %p127 = scmp.ne.s32.totalorder %s110, %s126
      %p128 = scmp.eq.s32.totalorder %s18, 0
      %p129 = por %p127, %p128
      %p130 = scmp.le.s32.totalorder 1, %s12
      %p131 = scmp.lt.s32.totalorder %s12, 3
      %p132 = pnand %p130, %p131
      %p133 = pneg %p132
      // Predicated region
      $region9: #{tpu_custom_call.1} parent=5 // pred_check
        _
      $region10: #{tpu_custom_call.1} parent=5 // pred_check_branch
        %135 = sbr.rel (%p132) target = $region12
      $region11: #{tpu_custom_call.1} parent=5 // pred_region
        %s136 = ssub.s32 %s12, 1
        // Predicated region
        $region13: #{tpu_custom_call.1} parent=11 // pred_check
          %p137 = pneg %p73
        $region14: #{tpu_custom_call.1} parent=11 // pred_check_branch
          %139 = sbr.rel (%p137) target = $region16
        $region15: #{tpu_custom_call.1} parent=11 // pred_region
          _
        $region16: #{tpu_custom_call.1} parent=11 // pred_fallthru
          _
        // Predicated region
        $region17: #{tpu_custom_call.1} parent=11 // pred_check
          %p140 = pneg %p94
        $region18: #{tpu_custom_call.1} parent=11 // pred_check_branch
          %142 = sbr.rel (%p140) target = $region20
        $region19: #{tpu_custom_call.1} parent=11 // pred_region
          _
        $region20: #{tpu_custom_call.1} parent=11 // pred_fallthru
          _
      $region12: #{tpu_custom_call.1} parent=5 // pred_fallthru
        _
      %p143 = scmp.lt.s32.totalorder %s12, 2
      // Predicated region
      $region21: #{tpu_custom_call.1} parent=5 // pred_check
        %p144 = pneg %p143
      $region22: #{tpu_custom_call.1} parent=5 // pred_check_branch
        %146 = sbr.rel (%p144) target = $region24
      $region23: #{tpu_custom_call.1} parent=5 // pred_region
        // Predicated region
        $region25: #{tpu_custom_call.1} parent=23 // pred_check
          %p147 = pneg %p46
        $region26: #{tpu_custom_call.1} parent=23 // pred_check_branch
          %149 = sbr.rel (%p147) target = $region28
        $region27: #{tpu_custom_call.1} parent=23 // pred_region
          %s150 = sand.u32 %s36, 1
          %s151 = scalar_lea.sflag [#allocation3], %s150
          %s152 = sand.u32 %s36, 1
          %s153 = smul.addr %s152, 64
          %s154 = scalar_lea.vmem [#allocation2], %s153
          %s155 = smul.u32 2, %s20
          %s157 = ssub.s32 1024, 1024
          %158 = vsyncadd %s151, %s157
          %s159 = smul.addr %s19, 8
          %s160 = sadd.s32 %s155, %s159
          %s161 = smul.addr %s160, 128
          %s162 = scalar_lea.hbm %s0, %s161
          %s163 = sshll.u32 %s154, 4
          %s164 = int_to_ptr.vmem [resolvable:$true] %s163
          %169 = dma.hbm_to_vmem [thread:$0]  %s162, 1024, %s164, %s151, 256, 256, 16
        $region28: #{tpu_custom_call.1} parent=23 // pred_fallthru
          _
      $region24: #{tpu_custom_call.1} parent=5 // pred_fallthru
        _
      %p170 = scmp.le.s32.totalorder 1, %s12
      %p171 = scmp.lt.s32.totalorder %s12, 3
      %p172 = pnand %p170, %p171
      %p173 = pneg %p172
      // Predicated region
      $region29: #{tpu_custom_call.1} parent=5 // pred_check
        _
      $region30: #{tpu_custom_call.1} parent=5 // pred_check_branch
        %175 = sbr.rel (%p172) target = $region32
      $region31: #{tpu_custom_call.1} parent=5 // pred_region
        %s176 = ssub.s32 %s12, 1
        %s177 = sand.u32 %s39, 1
        %s178 = scalar_lea.sflag [#allocation3], %s177
        %s179 = sand.u32 %s39, 1
        %s180 = smul.addr %s179, 64
        %s181 = scalar_lea.vmem [#allocation2], %s180
        // Predicated region
        $region33: #{tpu_custom_call.1} parent=31 // pred_check
          %p182 = pneg %p52
        $region34: #{tpu_custom_call.1} parent=31 // pred_check_branch
          %184 = sbr.rel (%p182) target = $region36
        $region35: #{tpu_custom_call.1} parent=31 // pred_region
          %185 = dma.done %s178, 1024
        $region36: #{tpu_custom_call.1} parent=31 // pred_fallthru
          _
        %s186 = sand.u32 %s39, 1
        %s187 = scalar_lea.sflag [#allocation3], %s186
        %s188 = sand.u32 %s39, 1
        %s189 = smul.addr %s188, 64
        %s190 = scalar_lea.vmem [#allocation2], %s189
        %p191 = pneg %p52
        %p192 = pneg %p49
        %p193 = pneg %p73
        %p194 = pneg %p70
        %p195 = pneg %p94
        %p196 = pneg %p91
        %p197 = pneg %p122
        %p198 = pneg %p119
        %s199 = smul.u32 32, %s22
        %p200 = scmp.lt.s32.totalorder %s21, 1
        %s201 = scalar_select %p200, %s21, 1
        %p202 = scmp.lt.s32.totalorder %s199, 31
        %s203 = scalar_select %p202, %s199, 31
        %s204 = smul.addr %s201, 32
        %s205 = sadd.s32 %s203, %s204
        %s206 = smul.addr %s205, 8
        %s207 = scalar_lea.vmem %s3, %s206
        %s208 = smul.u32 2, %s22
        %s209 = smul.u32 32, %s22
        %p210 = scmp.lt.s32.totalorder %s21, 1
        %s211 = scalar_select %p210, %s21, 1
        %p212 = scmp.lt.s32.totalorder %s209, 31
        %s213 = scalar_select %p212, %s209, 31
        %s214 = smul.addr %s211, 32
        %s215 = sadd.s32 %s213, %s214
        %s216 = smul.addr %s215, 8
        %s217 = scalar_lea.vmem %s3, %s216
        %s218 = smul.u32 32, %s22
        %v219 = vld [vmem:[%s181] sm:$0xff]
        %v220 = vld [vmem:[%s181 + $0x8] sm:$0xff]
        %v221 = vld [vmem:[%s181 + $0x10] sm:$0xff]
        %v222 = vld [vmem:[%s181 + $0x18] sm:$0xff]
        %v223 = vld [vmem:[%s181 + $0x20] sm:$0xff]
        %v224 = vld [vmem:[%s181 + $0x28] sm:$0xff]
        %v225 = vld [vmem:[%s181 + $0x30] sm:$0xff]
        %v226 = vld [vmem:[%s181 + $0x38] sm:$0xff]
        %v227 = vld [vmem:[%s1] sm:$0xff]
        %v228 = vld [vmem:[%s1 + $0x8] sm:$0xff]
        %v229 = vld [vmem:[%s1 + $0x10] sm:$0xff]
        %v230 = vld [vmem:[%s1 + $0x18] sm:$0xff]
        %v231 = vld [vmem:[%s2] sm:$0xff]
        %v232 = vld [vmem:[%s2 + $0x8] sm:$0xff]
        %v233 = vld [vmem:[%s2 + $0x10] sm:$0xff]
        %v234 = vld [vmem:[%s2 + $0x18] sm:$0xff]
        %236 = vset.pattern.permute.xlu0 0
        %237 = vperm.xlu0 %236, %v231
        %v238 = vpop.permute.xlu0 %237
        %241 = vset.pattern.permute.xlu0 0
        %242 = vperm.xlu0 %241, %v232
        %v243 = vpop.permute.xlu0 %242
        %246 = vset.pattern.permute.xlu0 0
        %247 = vperm.xlu0 %246, %v233
        %v248 = vpop.permute.xlu0 %247
        %251 = vset.pattern.permute.xlu0 0
        %252 = vperm.xlu0 %251, %v234
        %v253 = vpop.permute.xlu0 %252
        %vm255 = vcmask 261120
        %v257 = vsel %vm255, %v227, 0
        %v260 = vsel %vm255, %v228, 0
        %v263 = vsel %vm255, %v229, 0
        %v266 = vsel %vm255, %v230, 0
        %v268 = vand.u32 %v220, 4294901760
        %269 = vmatprep.subr.mxu0 %v268
        %v270 = vand.u32 %v219, 4294901760
        %271 = vmatpush1.msra.mxu0 %v270
        %v272 = vand.u32 %v222, 4294901760
        %273 = vmatprep.subr.mxu0 %v272
        %v274 = vand.u32 %v221, 4294901760
        %275 = vmatpush1.msra.mxu0 %v274
        %v276 = vand.u32 %v224, 4294901760
        %277 = vmatprep.subr.mxu0 %v276
        %v278 = vand.u32 %v223, 4294901760
        %279 = vmatpush1.msra.mxu0 %v278
        %v280 = vand.u32 %v226, 4294901760
        %281 = vmatprep.subr.mxu0 %v280
        %v282 = vand.u32 %v225, 4294901760
        %283 = vmatpush1.msra.mxu0 %v282
        %284 = vmatprep.subr.mxu0 0.0
        %285 = vmatpush1.msra.mxu0 0.0
        %286 = vmatprep.subr.mxu0 0.0
        %287 = vmatpush1.msra.mxu0 0.0
        %288 = vmatprep.subr.mxu0 0.0
        %289 = vmatpush1.msra.mxu0 0.0
        %290 = vmatprep.subr.mxu0 0.0
        %291 = vmatpush1.msra.mxu0 0.0
        %292 = vmatprep.subr.mxu0 0.0
        %293 = vmatpush1.msra.mxu0 0.0
        %294 = vmatprep.subr.mxu0 0.0
        %295 = vmatpush1.msra.mxu0 0.0
        %296 = vmatprep.subr.mxu0 0.0
        %297 = vmatpush1.msra.mxu0 0.0
        %298 = vmatprep.subr.mxu0 0.0
        %299 = vmatpush1.msra.mxu0 0.0
        %300 = vmatprep.subr.mxu0 0.0
        %301 = vmatpush1.msra.mxu0 0.0
        %302 = vmatprep.subr.mxu0 0.0
        %303 = vmatpush1.msra.mxu0 0.0
        %304 = vmatprep.subr.mxu0 0.0
        %305 = vmatpush1.msra.mxu0 0.0
        %306 = vmatprep.subr.mxu0 0.0
        %307 = vmatpush1.msra.mxu0 0.0
        %308 = vmatprep.subr.mxu0 0.0
        %309 = vmatpush1.msra.mxu0 0.0
        %310 = vmatprep.subr.mxu0 0.0
        %311 = vmatpush1.msra.mxu0 0.0
        %312 = vmatprep.subr.mxu0 0.0
        %313 = vmatpush1.msra.mxu0 0.0
        %314 = vmatprep.subr.mxu0 0.0
        %315 = vmatpush1.msra.mxu0 0.0
        %316 = vmatprep.subr.mxu0 0.0
        %317 = vmatpush1.msra.mxu0 0.0
        %318 = vmatprep.subr.mxu0 0.0
        %319 = vmatpush1.msra.mxu0 0.0
        %320 = vmatprep.subr.mxu0 0.0
        %321 = vmatpush1.msra.mxu0 0.0
        %322 = vmatprep.subr.mxu0 0.0
        %323 = vmatpush1.msra.mxu0 0.0
        %324 = vmatprep.subr.mxu0 0.0
        %325 = vmatpush1.msra.mxu0 0.0
        %326 = vmatprep.subr.mxu0 0.0
        %327 = vmatpush1.msra.mxu0 0.0
        %328 = vmatprep.subr.mxu0 0.0
        %329 = vmatpush1.msra.mxu0 0.0
        %330 = vmatprep.subr.mxu0 0.0
        %331 = vmatpush1.msra.mxu0 0.0
        %332 = vmatprep.subr.mxu0 0.0
        %333 = vmatpush1.msra.mxu0 0.0
        %334 = vmatprep.subr.mxu0 0.0
        %335 = vmatpush1.msra.mxu0 0.0
        %336 = vmatprep.subr.mxu0 0.0
        %337 = vmatpush1.msra.mxu0 0.0
        %338 = vmatprep.subr.mxu0 0.0
        %339 = vmatpush1.msra.mxu0 0.0
        %340 = vmatprep.mubr.f32.mxu0 0.0
        %v341 = vand.u32 %v257, 4294901760
        %v342 = vsub.f32 %v257, %v341
        %v343 = vand.u32 %v342, 4294901760
        %v344 = vsub.f32 %v342, %v343
        %v345 = vand.u32 %v344, 4294901760
        %346 = vmatmul.mubr.f32.gmra.mrb[0].mxu0 %v345
        %v347 = vpop.f32.mrb[0].mxu0
        %v348 = vadd.f32 %v238, %v347
        %v349 = vpop.f32.mrb[0].mxu0
        %v350 = vadd.f32 %v238, %v349
        %351 = vmatprep.mubr.f32.mxu0 0.0
        %v352 = vand.u32 %v260, 4294901760
        %v353 = vsub.f32 %v260, %v352
        %v354 = vand.u32 %v353, 4294901760
        %v355 = vsub.f32 %v353, %v354
        %v356 = vand.u32 %v355, 4294901760
        %357 = vmatmul.mubr.f32.gmra.mrb[0].mxu0 %v356
        %v358 = vpop.f32.mrb[0].mxu0
        %v359 = vadd.f32 %v243, %v358
        %v360 = vpop.f32.mrb[0].mxu0
        %v361 = vadd.f32 %v243, %v360
        %362 = vmatprep.mubr.f32.mxu0 0.0
        %v363 = vand.u32 %v263, 4294901760
        %v364 = vsub.f32 %v263, %v363
        %v365 = vand.u32 %v364, 4294901760
        %v366 = vsub.f32 %v364, %v365
        %v367 = vand.u32 %v366, 4294901760
        %368 = vmatmul.mubr.f32.gmra.mrb[0].mxu0 %v367
        %v369 = vpop.f32.mrb[0].mxu0
        %v370 = vadd.f32 %v248, %v369
        %v371 = vpop.f32.mrb[0].mxu0
        %v372 = vadd.f32 %v248, %v371
        %373 = vmatprep.mubr.f32.mxu0 0.0
        %v374 = vand.u32 %v266, 4294901760
        %v375 = vsub.f32 %v266, %v374
        %v376 = vand.u32 %v375, 4294901760
        %v377 = vsub.f32 %v375, %v376
        %v378 = vand.u32 %v377, 4294901760
        %379 = vmatmul.mubr.f32.gmra.mrb[0].mxu0 %v378
        %v380 = vpop.f32.mrb[0].mxu0
        %v381 = vadd.f32 %v253, %v380
        %v382 = vpop.f32.mrb[0].mxu0
        %v383 = vadd.f32 %v253, %v382
        %384 = vdwg.mxu0
        %v385 = vand.u32 %v220, 4294901760
        %v386 = vsub.f32 %v220, %v385
        %v387 = vand.u32 %v386, 4294901760
        %v388 = vsub.f32 %v386, %v387
        %v389 = vand.u32 %v388, 4294901760
        %390 = vmatprep.subr.mxu0 %v389
        %v391 = vand.u32 %v219, 4294901760
        %v392 = vsub.f32 %v219, %v391
        %v393 = vand.u32 %v392, 4294901760
        %v394 = vsub.f32 %v392, %v393
        %v395 = vand.u32 %v394, 4294901760
        %396 = vmatpush1.msra.mxu0 %v395
        %v397 = vand.u32 %v222, 4294901760
        %v398 = vsub.f32 %v222, %v397
        %v399 = vand.u32 %v398, 4294901760
        %v400 = vsub.f32 %v398, %v399
        %v401 = vand.u32 %v400, 4294901760
        %402 = vmatprep.subr.mxu0 %v401
        %v403 = vand.u32 %v221, 4294901760
        %v404 = vsub.f32 %v221, %v403
        %v405 = vand.u32 %v404, 4294901760
        %v406 = vsub.f32 %v404, %v405
        %v407 = vand.u32 %v406, 4294901760
        %408 = vmatpush1.msra.mxu0 %v407
        %v409 = vand.u32 %v224, 4294901760
        %v410 = vsub.f32 %v224, %v409
        %v411 = vand.u32 %v410, 4294901760
        %v412 = vsub.f32 %v410, %v411
        %v413 = vand.u32 %v412, 4294901760
        %414 = vmatprep.subr.mxu0 %v413
        %v415 = vand.u32 %v223, 4294901760
        %v416 = vsub.f32 %v223, %v415
        %v417 = vand.u32 %v416, 4294901760
        %v418 = vsub.f32 %v416, %v417
        %v419 = vand.u32 %v418, 4294901760
        %420 = vmatpush1.msra.mxu0 %v419
        %v421 = vand.u32 %v226, 4294901760
        %v422 = vsub.f32 %v226, %v421
        %v423 = vand.u32 %v422, 4294901760
        %v424 = vsub.f32 %v422, %v423
        %v425 = vand.u32 %v424, 4294901760
        %426 = vmatprep.subr.mxu0 %v425
        %v427 = vand.u32 %v225, 4294901760
        %v428 = vsub.f32 %v225, %v427
        %v429 = vand.u32 %v428, 4294901760
        %v430 = vsub.f32 %v428, %v429
        %v431 = vand.u32 %v430, 4294901760
        %432 = vmatpush1.msra.mxu0 %v431
        %433 = vmatprep.subr.mxu0 0.0
        %434 = vmatpush1.msra.mxu0 0.0
        %435 = vmatprep.subr.mxu0 0.0
        %436 = vmatpush1.msra.mxu0 0.0
        %437 = vmatprep.subr.mxu0 0.0
        %438 = vmatpush1.msra.mxu0 0.0
        %439 = vmatprep.subr.mxu0 0.0
        %440 = vmatpush1.msra.mxu0 0.0
        %441 = vmatprep.subr.mxu0 0.0
        %442 = vmatpush1.msra.mxu0 0.0
        %443 = vmatprep.subr.mxu0 0.0
        %444 = vmatpush1.msra.mxu0 0.0
        %445 = vmatprep.subr.mxu0 0.0
        %446 = vmatpush1.msra.mxu0 0.0
        %447 = vmatprep.subr.mxu0 0.0
        %448 = vmatpush1.msra.mxu0 0.0
        %449 = vmatprep.subr.mxu0 0.0
        %450 = vmatpush1.msra.mxu0 0.0
        %451 = vmatprep.subr.mxu0 0.0
        %452 = vmatpush1.msra.mxu0 0.0
        %453 = vmatprep.subr.mxu0 0.0
        %454 = vmatpush1.msra.mxu0 0.0
        %455 = vmatprep.subr.mxu0 0.0
        %456 = vmatpush1.msra.mxu0 0.0
        %457 = vmatprep.subr.mxu0 0.0
        %458 = vmatpush1.msra.mxu0 0.0
        %459 = vmatprep.subr.mxu0 0.0
        %460 = vmatpush1.msra.mxu0 0.0
        %461 = vmatprep.subr.mxu0 0.0
        %462 = vmatpush1.msra.mxu0 0.0
        %463 = vmatprep.subr.mxu0 0.0
        %464 = vmatpush1.msra.mxu0 0.0
        %465 = vmatprep.subr.mxu0 0.0
        %466 = vmatpush1.msra.mxu0 0.0
        %467 = vmatprep.subr.mxu0 0.0
        %468 = vmatpush1.msra.mxu0 0.0
        %469 = vmatprep.subr.mxu0 0.0
        %470 = vmatpush1.msra.mxu0 0.0
        %471 = vmatprep.subr.mxu0 0.0
        %472 = vmatpush1.msra.mxu0 0.0
        %473 = vmatprep.subr.mxu0 0.0
        %474 = vmatpush1.msra.mxu0 0.0
        %475 = vmatprep.subr.mxu0 0.0
        %476 = vmatpush1.msra.mxu0 0.0
        %477 = vmatprep.subr.mxu0 0.0
        %478 = vmatpush1.msra.mxu0 0.0
        %479 = vmatprep.subr.mxu0 0.0
        %480 = vmatpush1.msra.mxu0 0.0
        %481 = vmatprep.subr.mxu0 0.0
        %482 = vmatpush1.msra.mxu0 0.0
        %483 = vmatprep.subr.mxu0 0.0
        %484 = vmatpush1.msra.mxu0 0.0
        %485 = vmatprep.subr.mxu0 0.0
        %486 = vmatpush1.msra.mxu0 0.0
        %487 = vmatprep.subr.mxu0 0.0
        %488 = vmatpush1.msra.mxu0 0.0
        %489 = vmatprep.mubr.f32.mxu0 0.0
        %v490 = vand.u32 %v257, 4294901760
        %491 = vmatmul.mubr.f32.gmra.mrb[0].mxu0 %v490
        %v492 = vpop.f32.mrb[0].mxu0
        %v493 = vadd.f32 %v348, %v492
        %v494 = vpop.f32.mrb[0].mxu0
        %v495 = vadd.f32 %v350, %v494
        %496 = vmatprep.mubr.f32.mxu0 0.0
        %v497 = vand.u32 %v260, 4294901760
        %498 = vmatmul.mubr.f32.gmra.mrb[0].mxu0 %v497
        %v499 = vpop.f32.mrb[0].mxu0
        %v500 = vadd.f32 %v359, %v499
        %v501 = vpop.f32.mrb[0].mxu0
        %v502 = vadd.f32 %v361, %v501
        %503 = vmatprep.mubr.f32.mxu0 0.0
        %v504 = vand.u32 %v263, 4294901760
        %505 = vmatmul.mubr.f32.gmra.mrb[0].mxu0 %v504
        %v506 = vpop.f32.mrb[0].mxu0
        %v507 = vadd.f32 %v370, %v506
        %v508 = vpop.f32.mrb[0].mxu0
        %v509 = vadd.f32 %v372, %v508
        %510 = vmatprep.mubr.f32.mxu0 0.0
        %v511 = vand.u32 %v266, 4294901760
        %512 = vmatmul.mubr.f32.gmra.mrb[0].mxu0 %v511
        %v513 = vpop.f32.mrb[0].mxu0
        %v514 = vadd.f32 %v381, %v513
        %v515 = vpop.f32.mrb[0].mxu0
        %v516 = vadd.f32 %v383, %v515
        %517 = vdwg.mxu0
        %v518 = vand.u32 %v220, 4294901760
        %v519 = vsub.f32 %v220, %v518
        %520 = vmatprep.subr.mxu0 %v519
        %v521 = vand.u32 %v219, 4294901760
        %v522 = vsub.f32 %v219, %v521
        %523 = vmatpush1.msra.mxu0 %v522
        %v524 = vand.u32 %v222, 4294901760
        %v525 = vsub.f32 %v222, %v524
        %526 = vmatprep.subr.mxu0 %v525
        %v527 = vand.u32 %v221, 4294901760
        %v528 = vsub.f32 %v221, %v527
        %529 = vmatpush1.msra.mxu0 %v528
        %v530 = vand.u32 %v224, 4294901760
        %v531 = vsub.f32 %v224, %v530
        %532 = vmatprep.subr.mxu0 %v531
        %v533 = vand.u32 %v223, 4294901760
        %v534 = vsub.f32 %v223, %v533
        %535 = vmatpush1.msra.mxu0 %v534
        %v536 = vand.u32 %v226, 4294901760
        %v537 = vsub.f32 %v226, %v536
        %538 = vmatprep.subr.mxu0 %v537
        %v539 = vand.u32 %v225, 4294901760
        %v540 = vsub.f32 %v225, %v539
        %541 = vmatpush1.msra.mxu0 %v540
        %542 = vmatprep.subr.mxu0 0.0
        %543 = vmatpush1.msra.mxu0 0.0
        %544 = vmatprep.subr.mxu0 0.0
        %545 = vmatpush1.msra.mxu0 0.0
        %546 = vmatprep.subr.mxu0 0.0
        %547 = vmatpush1.msra.mxu0 0.0
        %548 = vmatprep.subr.mxu0 0.0
        %549 = vmatpush1.msra.mxu0 0.0
        %550 = vmatprep.subr.mxu0 0.0
        %551 = vmatpush1.msra.mxu0 0.0
        %552 = vmatprep.subr.mxu0 0.0
        %553 = vmatpush1.msra.mxu0 0.0
        %554 = vmatprep.subr.mxu0 0.0
        %555 = vmatpush1.msra.mxu0 0.0
        %556 = vmatprep.subr.mxu0 0.0
        %557 = vmatpush1.msra.mxu0 0.0
        %558 = vmatprep.subr.mxu0 0.0
        %559 = vmatpush1.msra.mxu0 0.0
        %560 = vmatprep.subr.mxu0 0.0
        %561 = vmatpush1.msra.mxu0 0.0
        %562 = vmatprep.subr.mxu0 0.0
        %563 = vmatpush1.msra.mxu0 0.0
        %564 = vmatprep.subr.mxu0 0.0
        %565 = vmatpush1.msra.mxu0 0.0
        %566 = vmatprep.subr.mxu0 0.0
        %567 = vmatpush1.msra.mxu0 0.0
        %568 = vmatprep.subr.mxu0 0.0
        %569 = vmatpush1.msra.mxu0 0.0
        %570 = vmatprep.subr.mxu0 0.0
        %571 = vmatpush1.msra.mxu0 0.0
        %572 = vmatprep.subr.mxu0 0.0
        %573 = vmatpush1.msra.mxu0 0.0
        %574 = vmatprep.subr.mxu0 0.0
        %575 = vmatpush1.msra.mxu0 0.0
        %576 = vmatprep.subr.mxu0 0.0
        %577 = vmatpush1.msra.mxu0 0.0
        %578 = vmatprep.subr.mxu0 0.0
        %579 = vmatpush1.msra.mxu0 0.0
        %580 = vmatprep.subr.mxu0 0.0
        %581 = vmatpush1.msra.mxu0 0.0
        %582 = vmatprep.subr.mxu0 0.0
        %583 = vmatpush1.msra.mxu0 0.0
        %584 = vmatprep.subr.mxu0 0.0
        %585 = vmatpush1.msra.mxu0 0.0
        %586 = vmatprep.subr.mxu0 0.0
        %587 = vmatpush1.msra.mxu0 0.0
        %588 = vmatprep.subr.mxu0 0.0
        %589 = vmatpush1.msra.mxu0 0.0
        %590 = vmatprep.subr.mxu0 0.0
        %591 = vmatpush1.msra.mxu0 0.0
        %592 = vmatprep.subr.mxu0 0.0
        %593 = vmatpush1.msra.mxu0 0.0
        %594 = vmatprep.subr.mxu0 0.0
        %595 = vmatpush1.msra.mxu0 0.0
        %596 = vmatprep.subr.mxu0 0.0
        %597 = vmatpush1.msra.mxu0 0.0
        %598 = vmatprep.mubr.f32.mxu0 0.0
        %v599 = vand.u32 %v257, 4294901760
        %v600 = vsub.f32 %v257, %v599
        %601 = vmatmul.mubr.f32.gmra.mrb[0].mxu0 %v600
        %v602 = vpop.f32.mrb[0].mxu0
        %v603 = vadd.f32 %v493, %v602
        %v604 = vpop.f32.mrb[0].mxu0
        %v605 = vadd.f32 %v495, %v604
        %606 = vmatprep.mubr.f32.mxu0 0.0
        %v607 = vand.u32 %v260, 4294901760
        %v608 = vsub.f32 %v260, %v607
        %609 = vmatmul.mubr.f32.gmra.mrb[0].mxu0 %v608
        %v610 = vpop.f32.mrb[0].mxu0
        %v611 = vadd.f32 %v500, %v610
        %v612 = vpop.f32.mrb[0].mxu0
        %v613 = vadd.f32 %v502, %v612
        %614 = vmatprep.mubr.f32.mxu0 0.0
        %v615 = vand.u32 %v263, 4294901760
        %v616 = vsub.f32 %v263, %v615
        %617 = vmatmul.mubr.f32.gmra.mrb[0].mxu0 %v616
        %v618 = vpop.f32.mrb[0].mxu0
        %v619 = vadd.f32 %v507, %v618
        %v620 = vpop.f32.mrb[0].mxu0
        %v621 = vadd.f32 %v509, %v620
        %622 = vmatprep.mubr.f32.mxu0 0.0
        %v623 = vand.u32 %v266, 4294901760
        %v624 = vsub.f32 %v266, %v623
        %625 = vmatmul.mubr.f32.gmra.mrb[0].mxu0 %v624
        %v626 = vpop.f32.mrb[0].mxu0
        %v627 = vadd.f32 %v514, %v626
        %v628 = vpop.f32.mrb[0].mxu0
        %v629 = vadd.f32 %v516, %v628
        %630 = vdwg.mxu0
        %v631 = vand.u32 %v220, 4294901760
        %632 = vmatprep.subr.mxu0 %v631
        %v633 = vand.u32 %v219, 4294901760
        %634 = vmatpush1.msra.mxu0 %v633
        %v635 = vand.u32 %v222, 4294901760
        %636 = vmatprep.subr.mxu0 %v635
        %v637 = vand.u32 %v221, 4294901760
        %638 = vmatpush1.msra.mxu0 %v637
        %v639 = vand.u32 %v224, 4294901760
        %640 = vmatprep.subr.mxu0 %v639
        %v641 = vand.u32 %v223, 4294901760
        %642 = vmatpush1.msra.mxu0 %v641
        %v643 = vand.u32 %v226, 4294901760
        %644 = vmatprep.subr.mxu0 %v643
        %v645 = vand.u32 %v225, 4294901760
        %646 = vmatpush1.msra.mxu0 %v645
        %647 = vmatprep.subr.mxu0 0.0
        %648 = vmatpush1.msra.mxu0 0.0
        %649 = vmatprep.subr.mxu0 0.0
        %650 = vmatpush1.msra.mxu0 0.0
        %651 = vmatprep.subr.mxu0 0.0
        %652 = vmatpush1.msra.mxu0 0.0
        %653 = vmatprep.subr.mxu0 0.0
        %654 = vmatpush1.msra.mxu0 0.0
        %655 = vmatprep.subr.mxu0 0.0
        %656 = vmatpush1.msra.mxu0 0.0
        %657 = vmatprep.subr.mxu0 0.0
        %658 = vmatpush1.msra.mxu0 0.0
        %659 = vmatprep.subr.mxu0 0.0
        %660 = vmatpush1.msra.mxu0 0.0
        %661 = vmatprep.subr.mxu0 0.0
        %662 = vmatpush1.msra.mxu0 0.0
        %663 = vmatprep.subr.mxu0 0.0
        %664 = vmatpush1.msra.mxu0 0.0
        %665 = vmatprep.subr.mxu0 0.0
        %666 = vmatpush1.msra.mxu0 0.0
        %667 = vmatprep.subr.mxu0 0.0
        %668 = vmatpush1.msra.mxu0 0.0
        %669 = vmatprep.subr.mxu0 0.0
        %670 = vmatpush1.msra.mxu0 0.0
        %671 = vmatprep.subr.mxu0 0.0
        %672 = vmatpush1.msra.mxu0 0.0
        %673 = vmatprep.subr.mxu0 0.0
        %674 = vmatpush1.msra.mxu0 0.0
        %675 = vmatprep.subr.mxu0 0.0
        %676 = vmatpush1.msra.mxu0 0.0
        %677 = vmatprep.subr.mxu0 0.0
        %678 = vmatpush1.msra.mxu0 0.0
        %679 = vmatprep.subr.mxu0 0.0
        %680 = vmatpush1.msra.mxu0 0.0
        %681 = vmatprep.subr.mxu0 0.0
        %682 = vmatpush1.msra.mxu0 0.0
        %683 = vmatprep.subr.mxu0 0.0
        %684 = vmatpush1.msra.mxu0 0.0
        %685 = vmatprep.subr.mxu0 0.0
        %686 = vmatpush1.msra.mxu0 0.0
        %687 = vmatprep.subr.mxu0 0.0
        %688 = vmatpush1.msra.mxu0 0.0
        %689 = vmatprep.subr.mxu0 0.0
        %690 = vmatpush1.msra.mxu0 0.0
        %691 = vmatprep.subr.mxu0 0.0
        %692 = vmatpush1.msra.mxu0 0.0
        %693 = vmatprep.subr.mxu0 0.0
        %694 = vmatpush1.msra.mxu0 0.0
        %695 = vmatprep.subr.mxu0 0.0
        %696 = vmatpush1.msra.mxu0 0.0
        %697 = vmatprep.subr.mxu0 0.0
        %698 = vmatpush1.msra.mxu0 0.0
        %699 = vmatprep.subr.mxu0 0.0
        %700 = vmatpush1.msra.mxu0 0.0
        %701 = vmatprep.subr.mxu0 0.0
        %702 = vmatpush1.msra.mxu0 0.0
        %703 = vmatprep.mubr.f32.mxu0 0.0
        %v704 = vand.u32 %v257, 4294901760
        %v705 = vsub.f32 %v257, %v704
        %v706 = vand.u32 %v705, 4294901760
        %707 = vmatmul.mubr.f32.gmra.mrb[0].mxu0 %v706
        %v708 = vpop.f32.mrb[0].mxu0
        %v709 = vadd.f32 %v603, %v708
        %v710 = vpop.f32.mrb[0].mxu0
        %v711 = vadd.f32 %v605, %v710
        %712 = vmatprep.mubr.f32.mxu0 0.0
        %v713 = vand.u32 %v260, 4294901760
        %v714 = vsub.f32 %v260, %v713
        %v715 = vand.u32 %v714, 4294901760
        %716 = vmatmul.mubr.f32.gmra.mrb[0].mxu0 %v715
        %v717 = vpop.f32.mrb[0].mxu0
        %v718 = vadd.f32 %v611, %v717
        %v719 = vpop.f32.mrb[0].mxu0
        %v720 = vadd.f32 %v613, %v719
        %721 = vmatprep.mubr.f32.mxu0 0.0
        %v722 = vand.u32 %v263, 4294901760
        %v723 = vsub.f32 %v263, %v722
        %v724 = vand.u32 %v723, 4294901760
        %725 = vmatmul.mubr.f32.gmra.mrb[0].mxu0 %v724
        %v726 = vpop.f32.mrb[0].mxu0
        %v727 = vadd.f32 %v619, %v726
        %v728 = vpop.f32.mrb[0].mxu0
        %v729 = vadd.f32 %v621, %v728
        %730 = vmatprep.mubr.f32.mxu0 0.0
        %v731 = vand.u32 %v266, 4294901760
        %v732 = vsub.f32 %v266, %v731
        %v733 = vand.u32 %v732, 4294901760
        %734 = vmatmul.mubr.f32.gmra.mrb[0].mxu0 %v733
        %v735 = vpop.f32.mrb[0].mxu0
        %v736 = vadd.f32 %v627, %v735
        %v737 = vpop.f32.mrb[0].mxu0
        %v738 = vadd.f32 %v629, %v737
        %739 = vdwg.mxu0
        %v740 = vand.u32 %v220, 4294901760
        %v741 = vsub.f32 %v220, %v740
        %v742 = vand.u32 %v741, 4294901760
        %743 = vmatprep.subr.mxu0 %v742
        %v744 = vand.u32 %v219, 4294901760
        %v745 = vsub.f32 %v219, %v744
        %v746 = vand.u32 %v745, 4294901760
        %747 = vmatpush1.msra.mxu0 %v746
        %v748 = vand.u32 %v222, 4294901760
        %v749 = vsub.f32 %v222, %v748
        %v750 = vand.u32 %v749, 4294901760
        %751 = vmatprep.subr.mxu0 %v750
        %v752 = vand.u32 %v221, 4294901760
        %v753 = vsub.f32 %v221, %v752
        %v754 = vand.u32 %v753, 4294901760
        %755 = vmatpush1.msra.mxu0 %v754
        %v756 = vand.u32 %v224, 4294901760
        %v757 = vsub.f32 %v224, %v756
        %v758 = vand.u32 %v757, 4294901760
        %759 = vmatprep.subr.mxu0 %v758
        %v760 = vand.u32 %v223, 4294901760
        %v761 = vsub.f32 %v223, %v760
        %v762 = vand.u32 %v761, 4294901760
        %763 = vmatpush1.msra.mxu0 %v762
        %v764 = vand.u32 %v226, 4294901760
        %v765 = vsub.f32 %v226, %v764
        %v766 = vand.u32 %v765, 4294901760
        %767 = vmatprep.subr.mxu0 %v766
        %v768 = vand.u32 %v225, 4294901760
        %v769 = vsub.f32 %v225, %v768
        %v770 = vand.u32 %v769, 4294901760
        %771 = vmatpush1.msra.mxu0 %v770
        %772 = vmatprep.subr.mxu0 0.0
        %773 = vmatpush1.msra.mxu0 0.0
        %774 = vmatprep.subr.mxu0 0.0
        %775 = vmatpush1.msra.mxu0 0.0
        %776 = vmatprep.subr.mxu0 0.0
        %777 = vmatpush1.msra.mxu0 0.0
        %778 = vmatprep.subr.mxu0 0.0
        %779 = vmatpush1.msra.mxu0 0.0
        %780 = vmatprep.subr.mxu0 0.0
        %781 = vmatpush1.msra.mxu0 0.0
        %782 = vmatprep.subr.mxu0 0.0
        %783 = vmatpush1.msra.mxu0 0.0
        %784 = vmatprep.subr.mxu0 0.0
        %785 = vmatpush1.msra.mxu0 0.0
        %786 = vmatprep.subr.mxu0 0.0
        %787 = vmatpush1.msra.mxu0 0.0
        %788 = vmatprep.subr.mxu0 0.0
        %789 = vmatpush1.msra.mxu0 0.0
        %790 = vmatprep.subr.mxu0 0.0
        %791 = vmatpush1.msra.mxu0 0.0
        %792 = vmatprep.subr.mxu0 0.0
        %793 = vmatpush1.msra.mxu0 0.0
        %794 = vmatprep.subr.mxu0 0.0
        %795 = vmatpush1.msra.mxu0 0.0
        %796 = vmatprep.subr.mxu0 0.0
        %797 = vmatpush1.msra.mxu0 0.0
        %798 = vmatprep.subr.mxu0 0.0
        %799 = vmatpush1.msra.mxu0 0.0
        %800 = vmatprep.subr.mxu0 0.0
        %801 = vmatpush1.msra.mxu0 0.0
        %802 = vmatprep.subr.mxu0 0.0
        %803 = vmatpush1.msra.mxu0 0.0
        %804 = vmatprep.subr.mxu0 0.0
        %805 = vmatpush1.msra.mxu0 0.0
        %806 = vmatprep.subr.mxu0 0.0
        %807 = vmatpush1.msra.mxu0 0.0
        %808 = vmatprep.subr.mxu0 0.0
        %809 = vmatpush1.msra.mxu0 0.0
        %810 = vmatprep.subr.mxu0 0.0
        %811 = vmatpush1.msra.mxu0 0.0
        %812 = vmatprep.subr.mxu0 0.0
        %813 = vmatpush1.msra.mxu0 0.0
        %814 = vmatprep.subr.mxu0 0.0
        %815 = vmatpush1.msra.mxu0 0.0
        %816 = vmatprep.subr.mxu0 0.0
        %817 = vmatpush1.msra.mxu0 0.0
        %818 = vmatprep.subr.mxu0 0.0
        %819 = vmatpush1.msra.mxu0 0.0
        %820 = vmatprep.subr.mxu0 0.0
        %821 = vmatpush1.msra.mxu0 0.0
        %822 = vmatprep.subr.mxu0 0.0
        %823 = vmatpush1.msra.mxu0 0.0
        %824 = vmatprep.subr.mxu0 0.0
        %825 = vmatpush1.msra.mxu0 0.0
        %826 = vmatprep.subr.mxu0 0.0
        %827 = vmatpush1.msra.mxu0 0.0
        %828 = vmatprep.mubr.f32.mxu0 0.0
        %v829 = vand.u32 %v257, 4294901760
        %830 = vmatmul.mubr.f32.gmra.mrb[0].mxu0 %v829
        %v831 = vpop.f32.mrb[0].mxu0
        %v832 = vadd.f32 %v709, %v831
        %v833 = vpop.f32.mrb[0].mxu0
        %v834 = vadd.f32 %v711, %v833
        %835 = vmatprep.mubr.f32.mxu0 0.0
        %v836 = vand.u32 %v260, 4294901760
        %837 = vmatmul.mubr.f32.gmra.mrb[0].mxu0 %v836
        %v838 = vpop.f32.mrb[0].mxu0
        %v839 = vadd.f32 %v718, %v838
        %v840 = vpop.f32.mrb[0].mxu0
        %v841 = vadd.f32 %v720, %v840
        %842 = vmatprep.mubr.f32.mxu0 0.0
        %v843 = vand.u32 %v263, 4294901760
        %844 = vmatmul.mubr.f32.gmra.mrb[0].mxu0 %v843
        %v845 = vpop.f32.mrb[0].mxu0
        %v846 = vadd.f32 %v727, %v845
        %v847 = vpop.f32.mrb[0].mxu0
        %v848 = vadd.f32 %v729, %v847
        %849 = vmatprep.mubr.f32.mxu0 0.0
        %v850 = vand.u32 %v266, 4294901760
        %851 = vmatmul.mubr.f32.gmra.mrb[0].mxu0 %v850
        %v852 = vpop.f32.mrb[0].mxu0
        %v853 = vadd.f32 %v736, %v852
        %v854 = vpop.f32.mrb[0].mxu0
        %v855 = vadd.f32 %v738, %v854
        %856 = vdwg.mxu0
        %v857 = vand.u32 %v220, 4294901760
        %858 = vmatprep.subr.mxu0 %v857
        %v859 = vand.u32 %v219, 4294901760
        %860 = vmatpush1.msra.mxu0 %v859
        %v861 = vand.u32 %v222, 4294901760
        %862 = vmatprep.subr.mxu0 %v861
        %v863 = vand.u32 %v221, 4294901760
        %864 = vmatpush1.msra.mxu0 %v863
        %v865 = vand.u32 %v224, 4294901760
        %866 = vmatprep.subr.mxu0 %v865
        %v867 = vand.u32 %v223, 4294901760
        %868 = vmatpush1.msra.mxu0 %v867
        %v869 = vand.u32 %v226, 4294901760
        %870 = vmatprep.subr.mxu0 %v869
        %v871 = vand.u32 %v225, 4294901760
        %872 = vmatpush1.msra.mxu0 %v871
        %873 = vmatprep.subr.mxu0 0.0
        %874 = vmatpush1.msra.mxu0 0.0
        %875 = vmatprep.subr.mxu0 0.0
        %876 = vmatpush1.msra.mxu0 0.0
        %877 = vmatprep.subr.mxu0 0.0
        %878 = vmatpush1.msra.mxu0 0.0
        %879 = vmatprep.subr.mxu0 0.0
        %880 = vmatpush1.msra.mxu0 0.0
        %881 = vmatprep.subr.mxu0 0.0
        %882 = vmatpush1.msra.mxu0 0.0
        %883 = vmatprep.subr.mxu0 0.0
        %884 = vmatpush1.msra.mxu0 0.0
        %885 = vmatprep.subr.mxu0 0.0
        %886 = vmatpush1.msra.mxu0 0.0
        %887 = vmatprep.subr.mxu0 0.0
        %888 = vmatpush1.msra.mxu0 0.0
        %889 = vmatprep.subr.mxu0 0.0
        %890 = vmatpush1.msra.mxu0 0.0
        %891 = vmatprep.subr.mxu0 0.0
        %892 = vmatpush1.msra.mxu0 0.0
        %893 = vmatprep.subr.mxu0 0.0
        %894 = vmatpush1.msra.mxu0 0.0
        %895 = vmatprep.subr.mxu0 0.0
        %896 = vmatpush1.msra.mxu0 0.0
        %897 = vmatprep.subr.mxu0 0.0
        %898 = vmatpush1.msra.mxu0 0.0
        %899 = vmatprep.subr.mxu0 0.0
        %900 = vmatpush1.msra.mxu0 0.0
        %901 = vmatprep.subr.mxu0 0.0
        %902 = vmatpush1.msra.mxu0 0.0
        %903 = vmatprep.subr.mxu0 0.0
        %904 = vmatpush1.msra.mxu0 0.0
        %905 = vmatprep.subr.mxu0 0.0
        %906 = vmatpush1.msra.mxu0 0.0
        %907 = vmatprep.subr.mxu0 0.0
        %908 = vmatpush1.msra.mxu0 0.0
        %909 = vmatprep.subr.mxu0 0.0
        %910 = vmatpush1.msra.mxu0 0.0
        %911 = vmatprep.subr.mxu0 0.0
        %912 = vmatpush1.msra.mxu0 0.0
        %913 = vmatprep.subr.mxu0 0.0
        %914 = vmatpush1.msra.mxu0 0.0
        %915 = vmatprep.subr.mxu0 0.0
        %916 = vmatpush1.msra.mxu0 0.0
        %917 = vmatprep.subr.mxu0 0.0
        %918 = vmatpush1.msra.mxu0 0.0
        %919 = vmatprep.subr.mxu0 0.0
        %920 = vmatpush1.msra.mxu0 0.0
        %921 = vmatprep.subr.mxu0 0.0
        %922 = vmatpush1.msra.mxu0 0.0
        %923 = vmatprep.subr.mxu0 0.0
        %924 = vmatpush1.msra.mxu0 0.0
        %925 = vmatprep.subr.mxu0 0.0
        %926 = vmatpush1.msra.mxu0 0.0
        %927 = vmatprep.subr.mxu0 0.0
        %928 = vmatpush1.msra.mxu0 0.0
        %929 = vmatprep.mubr.f32.mxu0 0.0
        %v930 = vand.u32 %v257, 4294901760
        %931 = vmatmul.mubr.f32.gmra.mrb[0].mxu0 %v930
        %v932 = vpop.f32.mrb[0].mxu0
        %v933 = vadd.f32 %v832, %v932
        %v934 = vpop.f32.mrb[0].mxu0
        %v935 = vadd.f32 %v834, %v934
        %936 = vmatprep.mubr.f32.mxu0 0.0
        %v937 = vand.u32 %v260, 4294901760
        %938 = vmatmul.mubr.f32.gmra.mrb[0].mxu0 %v937
        %v939 = vpop.f32.mrb[0].mxu0
        %v940 = vadd.f32 %v839, %v939
        %v941 = vpop.f32.mrb[0].mxu0
        %v942 = vadd.f32 %v841, %v941
        %943 = vmatprep.mubr.f32.mxu0 0.0
        %v944 = vand.u32 %v263, 4294901760
        %945 = vmatmul.mubr.f32.gmra.mrb[0].mxu0 %v944
        %v946 = vpop.f32.mrb[0].mxu0
        %v947 = vadd.f32 %v846, %v946
        %v948 = vpop.f32.mrb[0].mxu0
        %v949 = vadd.f32 %v848, %v948
        %950 = vmatprep.mubr.f32.mxu0 0.0
        %v951 = vand.u32 %v266, 4294901760
        %952 = vmatmul.mubr.f32.gmra.mrb[0].mxu0 %v951
        %v953 = vpop.f32.mrb[0].mxu0
        %v954 = vadd.f32 %v853, %v953
        %v955 = vpop.f32.mrb[0].mxu0
        %v956 = vadd.f32 %v855, %v955
        %957 = vdwg.mxu0
        %958 = vxpose.xlu0.b32.start [1/16] %v933, 128
        %959 = vxpose.xlu0.b32.cont [2/16] %v940, 128
        %960 = vxpose.xlu0.b32.cont [3/16] %v947, 128
        %961 = vxpose.xlu0.b32.cont [4/16] %v954, 128
        %962 = vxpose.xlu0.b32.cont [5/16] 0.0, 128
        %963 = vxpose.xlu0.b32.cont [6/16] 0.0, 128
        %964 = vxpose.xlu0.b32.cont [7/16] 0.0, 128
        %965 = vxpose.xlu0.b32.cont [8/16] 0.0, 128
        %966 = vxpose.xlu0.b32.cont [9/16] 0.0, 128
        %967 = vxpose.xlu0.b32.cont [10/16] 0.0, 128
        %968 = vxpose.xlu0.b32.cont [11/16] 0.0, 128
        %969 = vxpose.xlu0.b32.cont [12/16] 0.0, 128
        %970 = vxpose.xlu0.b32.cont [13/16] 0.0, 128
        %971 = vxpose.xlu0.b32.cont [14/16] 0.0, 128
        %972 = vxpose.xlu0.b32.cont [15/16] 0.0, 128
        %973 = vxpose.xlu0.b32.end [16/16] 0.0, 128
        %v974 = vpop.trf.xlu0
        %v975 = vpop.trf.xlu0
        %v976 = vpop.trf.xlu0
        %v977 = vpop.trf.xlu0
        %v978 = vpop.trf.xlu0
        %v979 = vpop.trf.xlu0
        %v980 = vpop.trf.xlu0
        %v981 = vpop.trf.xlu0
        %v982 = vpop.trf.xlu0
        %v983 = vpop.trf.xlu0
        %v984 = vpop.trf.xlu0
        %v985 = vpop.trf.xlu0
        %v986 = vpop.trf.xlu0
        %v987 = vpop.trf.xlu0
        %v988 = vpop.trf.xlu0
        %v989 = vpop.trf.xlu0
        %990 = vxpose.xlu0.b32.start [1/16] %v935, 128
        %991 = vxpose.xlu0.b32.cont [2/16] %v942, 128
        %992 = vxpose.xlu0.b32.cont [3/16] %v949, 128
        %993 = vxpose.xlu0.b32.cont [4/16] %v956, 128
        %994 = vxpose.xlu0.b32.cont [5/16] 0.0, 128
        %995 = vxpose.xlu0.b32.cont [6/16] 0.0, 128
        %996 = vxpose.xlu0.b32.cont [7/16] 0.0, 128
        %997 = vxpose.xlu0.b32.cont [8/16] 0.0, 128
        %998 = vxpose.xlu0.b32.cont [9/16] 0.0, 128
        %999 = vxpose.xlu0.b32.cont [10/16] 0.0, 128
        %1000 = vxpose.xlu0.b32.cont [11/16] 0.0, 128
        %1001 = vxpose.xlu0.b32.cont [12/16] 0.0, 128
        %1002 = vxpose.xlu0.b32.cont [13/16] 0.0, 128
        %1003 = vxpose.xlu0.b32.cont [14/16] 0.0, 128
        %1004 = vxpose.xlu0.b32.cont [15/16] 0.0, 128
        %1005 = vxpose.xlu0.b32.end [16/16] 0.0, 128
        %v1006 = vpop.trf.xlu0
        %v1007 = vpop.trf.xlu0
        %v1008 = vpop.trf.xlu0
        %v1009 = vpop.trf.xlu0
        %v1010 = vpop.trf.xlu0
        %v1011 = vpop.trf.xlu0
        %v1012 = vpop.trf.xlu0
        %v1013 = vpop.trf.xlu0
        %v1014 = vpop.trf.xlu0
        %v1015 = vpop.trf.xlu0
        %v1016 = vpop.trf.xlu0
        %v1017 = vpop.trf.xlu0
        %v1018 = vpop.trf.xlu0
        %v1019 = vpop.trf.xlu0
        %v1020 = vpop.trf.xlu0
        %v1021 = vpop.trf.xlu0
        %vm1022 = vcmask 244736
        %1023 = vst.msk [vmem:[%s217] sm:$0xff] %vm1022, %v974
        %1024 = vst.msk [vmem:[%s217 + $0x8] sm:$0xff] %vm1022, %v975
        %1025 = vst.msk [vmem:[%s217 + $0x10] sm:$0xff] %vm1022, %v976
        %1026 = vst.msk [vmem:[%s217 + $0x18] sm:$0xff] %vm1022, %v977
        %1027 = vst.msk [vmem:[%s217 + $0x20] sm:$0xff] %vm1022, %v978
        %1028 = vst.msk [vmem:[%s217 + $0x28] sm:$0xff] %vm1022, %v979
        %1029 = vst.msk [vmem:[%s217 + $0x30] sm:$0xff] %vm1022, %v980
        %1030 = vst.msk [vmem:[%s217 + $0x38] sm:$0xff] %vm1022, %v981
        %1031 = vst.msk [vmem:[%s217 + $0x40] sm:$0xff] %vm1022, %v982
        %1032 = vst.msk [vmem:[%s217 + $0x48] sm:$0xff] %vm1022, %v983
        %1033 = vst.msk [vmem:[%s217 + $0x50] sm:$0xff] %vm1022, %v984
        %1034 = vst.msk [vmem:[%s217 + $0x58] sm:$0xff] %vm1022, %v985
        %1035 = vst.msk [vmem:[%s217 + $0x60] sm:$0xff] %vm1022, %v986
        %1036 = vst.msk [vmem:[%s217 + $0x68] sm:$0xff] %vm1022, %v987
        %1037 = vst.msk [vmem:[%s217 + $0x70] sm:$0xff] %vm1022, %v988
        %1038 = vst.msk [vmem:[%s217 + $0x78] sm:$0xff] %vm1022, %v989
        %1039 = vst.msk [vmem:[%s217 + $0x80] sm:$0xff] %vm1022, %v1006
        %1040 = vst.msk [vmem:[%s217 + $0x88] sm:$0xff] %vm1022, %v1007
        %1041 = vst.msk [vmem:[%s217 + $0x90] sm:$0xff] %vm1022, %v1008
        %1042 = vst.msk [vmem:[%s217 + $0x98] sm:$0xff] %vm1022, %v1009
        %1043 = vst.msk [vmem:[%s217 + $0xa0] sm:$0xff] %vm1022, %v1010
        %1044 = vst.msk [vmem:[%s217 + $0xa8] sm:$0xff] %vm1022, %v1011
        %1045 = vst.msk [vmem:[%s217 + $0xb0] sm:$0xff] %vm1022, %v1012
        %1046 = vst.msk [vmem:[%s217 + $0xb8] sm:$0xff] %vm1022, %v1013
        %1047 = vst.msk [vmem:[%s217 + $0xc0] sm:$0xff] %vm1022, %v1014
        %1048 = vst.msk [vmem:[%s217 + $0xc8] sm:$0xff] %vm1022, %v1015
        %1049 = vst.msk [vmem:[%s217 + $0xd0] sm:$0xff] %vm1022, %v1016
        %1050 = vst.msk [vmem:[%s217 + $0xd8] sm:$0xff] %vm1022, %v1017
        %1051 = vst.msk [vmem:[%s217 + $0xe0] sm:$0xff] %vm1022, %v1018
        %1052 = vst.msk [vmem:[%s217 + $0xe8] sm:$0xff] %vm1022, %v1019
        %1053 = vst.msk [vmem:[%s217 + $0xf0] sm:$0xff] %vm1022, %v1020
        %1054 = vst.msk [vmem:[%s217 + $0xf8] sm:$0xff] %vm1022, %v1021
        %s1055 = smul.u32 32, %s22
        %p1056 = scmp.lt.s32.totalorder %s21, 1
        %s1057 = scalar_select %p1056, %s21, 1
        %p1058 = scmp.lt.s32.totalorder %s1055, 31
        %s1059 = scalar_select %p1058, %s1055, 31
        %s1060 = smul.addr %s1057, 32
        %s1061 = sadd.s32 %s1059, %s1060
        %s1062 = smul.addr %s1061, 8
        %s1063 = scalar_lea.vmem %s3, %s1062
        // Predicated region
        $region37: #{tpu_custom_call.1} parent=31 // pred_check
          %p1064 = pneg %p119
        $region38: #{tpu_custom_call.1} parent=31 // pred_check_branch
          %1066 = sbr.rel (%p1064) target = $region40
        $region39: #{tpu_custom_call.1} parent=31 // pred_region
          %s1067 = smul.u32 32, %s22
        $region40: #{tpu_custom_call.1} parent=31 // pred_fallthru
          _
      $region32: #{tpu_custom_call.1} parent=5 // pred_fallthru
        _
      %p1068 = scmp.le.s32.totalorder 2, %s12
      // Predicated region
      $region41: #{tpu_custom_call.1} parent=5 // pred_check
        %p1069 = pneg %p1068
      $region42: #{tpu_custom_call.1} parent=5 // pred_check_branch
        %1071 = sbr.rel (%p1069) target = $region44
      $region43: #{tpu_custom_call.1} parent=5 // pred_region
        %s1072 = ssub.s32 %s12, 2
        // Predicated region
        $region45: #{tpu_custom_call.1} parent=43 // pred_check
          %p1073 = pneg %p125
        $region46: #{tpu_custom_call.1} parent=43 // pred_check_branch
          %1075 = sbr.rel (%p1073) target = $region48
        $region47: #{tpu_custom_call.1} parent=43 // pred_region
          %s1076 = smul.u32 32, %s24
          %p1077 = scmp.lt.s32.totalorder %s23, 1
          %s1078 = scalar_select %p1077, %s23, 1
          %p1079 = scmp.lt.s32.totalorder %s1076, 31
          %s1080 = scalar_select %p1079, %s1076, 31
          %s1081 = smul.addr %s1078, 32
          %s1082 = sadd.s32 %s1080, %s1081
          %s1083 = smul.addr %s1082, 8
          %s1084 = scalar_lea.vmem %s3, %s1083
        $region48: #{tpu_custom_call.1} parent=43 // pred_fallthru
          _
      $region44: #{tpu_custom_call.1} parent=5 // pred_fallthru
        _
    $region6: #{tpu_custom_call.1} parent=1 // loop_footer
      %s16 = sadd.s32 1, %s12
    $region7: #{tpu_custom_call.1} parent=1 // loop_footer_branch
      %11 = sbr.rel target = $region3
    $region8: #{tpu_custom_call.1} parent=1 // loop_exit
      _
    %1085 = vsyncpa [#allocation3], 1
    %s1086 = scalar_lea.sflag [#allocation3], 1
    %1087 = vsyncpa %s1086, 1

</llo_original>
